<compile_context>
chip_gen: v5e
topology: v5e:2x2
jax: 0.10.0
libtpu: 0.0.40
codegen_flags: <defaults>
</compile_context>

<pallas_src>
import functools

import numpy as np
import jax
import jax.numpy as jnp
from jax.experimental import pallas as pl
from jax.experimental.pallas import tpu as pltpu


# ----------------------------------------------------------------------------
# Host-side SDF preprocessing (numpy) — mirrors compute_sdf1_1.
# TODO(synk): scipy.ndimage.distance_transform_edt / skimage find_boundaries
#             have no Pallas equivalent; reimplemented in plain numpy (brute
#             force EDT, valid for the small synthetic shapes used here).
# ----------------------------------------------------------------------------
def _edt(mask):
    """Euclidean distance from every True voxel to the nearest False voxel."""
    dist = np.zeros(mask.shape, dtype=np.float64)
    fg = np.argwhere(mask)
    bg = np.argwhere(~mask)
    if fg.size == 0 or bg.size == 0:
        return dist
    d2 = ((fg[:, None, :] - bg[None, :, :]) ** 2).sum(-1)
    dist[tuple(fg.T)] = np.sqrt(d2.min(axis=1))
    return dist


def _inner_boundaries(mask):
    """Foreground voxels with at least one face-adjacent background voxel."""
    ndim = mask.ndim
    neighbor_bg = np.zeros_like(mask)
    for ax in range(ndim):
        for shift in (1, -1):
            shifted = np.ones_like(mask)  # out-of-image treated as foreground
            src = [slice(None)] * ndim
            dst = [slice(None)] * ndim
            if shift == 1:
                src[ax] = slice(1, None)
                dst[ax] = slice(0, -1)
            else:
                src[ax] = slice(0, -1)
                dst[ax] = slice(1, None)
            shifted[tuple(dst)] = mask[tuple(src)]
            neighbor_bg |= ~shifted
    return (mask & neighbor_bg).astype(np.uint8)


def compute_sdf_plane_np(img_gt):
    """Per-batch normalized SDF plane (shape (B, *spatial)).

    This is the plane the reference writes into every channel 1..C-1 (channel
    0 stays zero)."""
    img_gt = np.asarray(img_gt).astype(np.uint8)
    plane = np.zeros(img_gt.shape, dtype=np.float64)
    for b in range(img_gt.shape[0]):
        posmask = img_gt[b].astype(bool)
        if not posmask.any():
            continue
        negmask = ~posmask
        posdis = _edt(posmask)
        negdis = _edt(negmask)
        boundary = _inner_boundaries(posmask)
        sdf = (negdis - negdis.min()) / (negdis.max() - negdis.min()) \
            - (posdis - posdis.min()) / (posdis.max() - posdis.min())
        sdf[boundary == 1] = 0
        plane[b] = sdf
    return plane


def compute_sdf1_1_np(img_gt, out_shape):
    """Full (B, C, ...) SDF exactly as the reference builds it (for checking)."""
    plane = compute_sdf_plane_np(img_gt)
    normalized_sdf = np.zeros(out_shape, dtype=np.float64)
    for c in range(1, out_shape[1]):  # channel 0 stays zero
        normalized_sdf[:, c] = plane
    return normalized_sdf


# ----------------------------------------------------------------------------
# Pallas kernel.
#
#   logits_ref : (1, C, tile_rows, 128) native dtype — class axis non-minor
#   sdf_ref    : (1, tile_rows, 128)    f32          — single shared SDF plane
#   out_ref    : (1, 1, 1, 128)         f32          — per-(batch, tile) partial
#
# Since sdf_c == 0 for c == 0 and identical for c >= 1:
#   sum_c softmax_c * sdf_c == sdf * (1 - softmax_0) == sdf * s / (1 + s)
# with s = sum_{c>=1} exp(x_c - x_0).
# ----------------------------------------------------------------------------
def _boundary_loss_kernel(logits_ref, sdf_ref, out_ref, *, rows, tile_rows):
    t = pl.program_id(1)
    C = logits_ref.shape[1]

    x0 = logits_ref[0, 0].astype(jnp.float32)                    # (T, 128)
    if C > 1:
        s = jnp.exp(logits_ref[0, 1].astype(jnp.float32) - x0)
        for c in range(2, C):                                    # small, unrolled
            s = s + jnp.exp(logits_ref[0, c].astype(jnp.float32) - x0)
    else:
        s = jnp.zeros_like(x0)

    # 1 - softmax_0 = s / (1 + s).  Guard overflow (s -> inf => limit is 1)
    # and OOB-garbage NaNs; jnp.where discards the bad operand.
    one_minus_p0 = jnp.where(
        s < jnp.float32(1e30),
        s * pl.reciprocal(jnp.float32(1.0) + s, approx=False),
        jnp.float32(1.0),
    )
    contrib = sdf_ref[0].astype(jnp.float32) * one_minus_p0      # (T, 128)

    if rows % tile_rows != 0:
        # Only the ragged last tile has out-of-bounds (garbage) rows: mask them.
        row_idx = t * tile_rows + jax.lax.broadcasted_iota(
            jnp.int32, contrib.shape, 0)
        contrib = jnp.where(row_idx < rows, contrib, jnp.float32(0.0))

    # Fold sublanes -> tiny lane-dense per-tile partial; the final cross-lane /
    # cross-tile reduction is a single jnp.sum outside the kernel.
    out_ref[...] = jnp.sum(contrib, axis=0, keepdims=True).reshape(out_ref.shape)


def boundary_loss_pallas(outputs, sdf_plane, *, vmem_budget_bytes=32 * 1024 * 1024):
    """outputs: (B, C, *spatial) logits (native dtype); sdf_plane: (B, *spatial) f32."""
    B, C = int(outputs.shape[0]), int(outputs.shape[1])
    spatial = outputs.shape[2:]
    S = int(np.prod(spatial)) if len(spatial) else 1
    rows = -(-S // 128)                        # cdiv(S, 128)
    S128 = rows * 128

    # Native dtype straight into pallas_call (no wrapper f32 upcast).
    logits = outputs.reshape(B, C, S)
    sdf = sdf_plane.astype(jnp.float32).reshape(B, S)
    if S128 != S:
        # <=127-element tail pad: zero logits are softmax-safe, zero SDF -> zero term.
        logits = jnp.pad(logits, ((0, 0), (0, 0), (0, S128 - S)))
        sdf = jnp.pad(sdf, ((0, 0), (0, S128 - S)))
    logits4 = logits.reshape(B, C, rows, 128)
    sdf3 = sdf.reshape(B, rows, 128)

    itemsize = logits.dtype.itemsize
    row_align = 16 if itemsize < 4 else 8      # bf16 packs two rows per sublane
    # Per-row VMEM: double-buffered logits + double-buffered sdf + ~6 f32 temp planes
    # (the kernel processes the C axis plane-by-plane, so temps don't scale with C).
    bytes_per_row = 2 * C * 128 * itemsize + 2 * 128 * 4 + 6 * 128 * 4
    budget_rows = max(row_align,
                      (vmem_budget_bytes // bytes_per_row) // row_align * row_align)

    if rows <= budget_rows:
        tile_rows = rows                       # block dim == full array dim: always legal
        n_tiles = 1
    else:
        tile_rows = budget_rows
        n_tiles = -(-rows // tile_rows)

    kernel = functools.partial(_boundary_loss_kernel, rows=rows, tile_rows=tile_rows)

    partials = pl.pallas_call(
        kernel,
        out_shape=jax.ShapeDtypeStruct((B, n_tiles, 1, 128), jnp.float32),
        grid_spec=pltpu.PrefetchScalarGridSpec(
            num_scalar_prefetch=0,
            grid=(B, n_tiles),
            in_specs=[
                pl.BlockSpec((1, C, tile_rows, 128), lambda b, t: (b, 0, t, 0)),
                pl.BlockSpec((1, tile_rows, 128), lambda b, t: (b, t, 0)),
            ],
            out_specs=pl.BlockSpec((1, 1, 1, 128), lambda b, t: (b, t, 0, 0)),
        ),
        compiler_params=pltpu.CompilerParams(
            # Each (b, t) writes its own partial -> no accumulator, so both grid
            # axes shard across TensorCores (v7x megacore, even when B == 1).
            dimension_semantics=("parallel", "parallel"),
            # v5e's scoped-VMEM default is only 16 MiB; be explicit (v7x-safe).
            vmem_limit_bytes=int(vmem_budget_bytes + (8 << 20)),
        ),
    )(logits4, sdf3)

    # Single cross-lane / cross-tile reduction outside the kernel.
    return jnp.sum(partials) / jnp.float32(B * C * S)


# ----------------------------------------------------------------------------
# Module-equivalent wrapper.
# ----------------------------------------------------------------------------
class BoundaryLoss:
    def __init__(self, classes):
        self.idx = list(range(classes))  # selects all classes, as in the reference

    def __call__(self, outputs, gt):
        C = int(outputs.shape[1])
        # The fused kernel relies on sdf[:,0]==0 and sdf[:,c>=1] identical, which
        # only reproduces the reference when idx selects every class.
        assert self.idx == list(range(C)), "kernel assumes idx == range(classes)"
        sdf_plane = compute_sdf_plane_np(np.asarray(gt))
        return boundary_loss_pallas(outputs, jnp.asarray(sdf_plane, jnp.float32))


if __name__ == "__main__":
    key = jax.random.PRNGKey(0)

    # --- Test 1: f32 logits, single-tile path -------------------------------
    B, C, X, Y, Z = 2, 4, 8, 8, 8
    k1, k2, k3 = jax.random.split(key, 3)
    outputs = jax.random.normal(k1, (B, C, X, Y, Z), dtype=jnp.float32)
    gt = (jax.random.uniform(k2, (B, X, Y, Z)) > 0.5).astype(jnp.float32)

    loss_fn = BoundaryLoss(classes=C)
    loss = jax.block_until_ready(loss_fn(outputs, gt))

    sdf_full = jnp.asarray(
        compute_sdf1_1_np(np.asarray(gt), (B, C, X, Y, Z)), jnp.float32)
    ref = jnp.mean(jax.nn.softmax(outputs, axis=1) * sdf_full)
    assert abs(float(loss) - float(ref)) < 1e-4, (float(loss), float(ref))

    # --- Test 2: bf16 logits (native-dtype path, no wrapper upcast) ---------
    outputs_bf = outputs.astype(jnp.bfloat16)
    loss_bf = jax.block_until_ready(loss_fn(outputs_bf, gt))
    ref_bf = jnp.mean(jax.nn.softmax(outputs_bf.astype(jnp.float32), axis=1) * sdf_full)
    assert abs(float(loss_bf) - float(ref_bf)) < 1e-4, (float(loss_bf), float(ref_bf))

    # --- Test 3: ragged rows + multi-tile masked path (B=1, small VMEM budget)
    B3, C3, X3, Y3, Z3 = 1, 3, 4, 24, 25        # S=2400 -> rows=19, tail pad of 32
    outputs3 = jax.random.normal(k3, (B3, C3, X3, Y3, Z3), dtype=jnp.float32)
    gt3 = (jax.random.uniform(k2, (B3, X3, Y3, Z3)) > 0.5).astype(jnp.float32)
    sdf_plane3 = jnp.asarray(compute_sdf_plane_np(np.asarray(gt3)), jnp.float32)
    # Tiny VMEM budget -> tile_rows=16, n_tiles=2, ragged last tile masked in-kernel.
    loss3 = jax.block_until_ready(
        boundary_loss_pallas(outputs3, sdf_plane3, vmem_budget_bytes=7168 * 20))
    sdf_full3 = jnp.asarray(
        compute_sdf1_1_np(np.asarray(gt3), (B3, C3, X3, Y3, Z3)), jnp.float32)
    ref3 = jnp.mean(jax.nn.softmax(outputs3, axis=1) * sdf_full3)
    assert abs(float(loss3) - float(ref3)) < 1e-4, (float(loss3), float(ref3))

    print("KERNEL_OK")
</pallas_src>

<mosaic_0001>
module attributes {stable_mosaic.version = 11 : i64} {
  func.func @_boundary_loss_kernel(%arg0: i32, %arg1: i32, %arg2: memref<1x4x4x128xf32, #tpu.memory_space<vmem>>, %arg3: memref<1x4x128xf32, #tpu.memory_space<vmem>>, %arg4: memref<1x1x1x128xf32, #tpu.memory_space<vmem>>) attributes {dimension_semantics = [#tpu.dimension_semantics<parallel>, #tpu.dimension_semantics<parallel>], iteration_bounds = array<i64: 2, 1>, scalar_prefetch = 0 : i64, scratch_operands = 0 : i64, tpu.core_type = #tpu.core_type<tc>, window_params = [{transform_indices = @transform_0, window_bounds = array<i64: 1, 4, 4, 128>}, {transform_indices = @transform_1, window_bounds = array<i64: 1, 4, 128>}, {transform_indices = @transform_2, window_bounds = array<i64: 1, 1, 1, 128>}]} {
    %c0 = arith.constant 0 : index
    %c0_0 = arith.constant 0 : index
    %c0_1 = arith.constant 0 : index
    %c0_2 = arith.constant 0 : index
    %0 = vector.load %arg2[%c0, %c0_0, %c0_1, %c0_2] : memref<1x4x4x128xf32, #tpu.memory_space<vmem>>, vector<1x1x4x128xf32>
    %1 = vector.shape_cast %0 : vector<1x1x4x128xf32> to vector<4x128xf32>
    %c0_3 = arith.constant 0 : index
    %c1 = arith.constant 1 : index
    %c0_4 = arith.constant 0 : index
    %c0_5 = arith.constant 0 : index
    %2 = vector.load %arg2[%c0_3, %c1, %c0_4, %c0_5] : memref<1x4x4x128xf32, #tpu.memory_space<vmem>>, vector<1x1x4x128xf32>
    %3 = vector.shape_cast %2 : vector<1x1x4x128xf32> to vector<4x128xf32>
    %4 = arith.subf %3, %1 : vector<4x128xf32>
    %5 = math.exp %4 : vector<4x128xf32>
    %c0_6 = arith.constant 0 : index
    %c2 = arith.constant 2 : index
    %c0_7 = arith.constant 0 : index
    %c0_8 = arith.constant 0 : index
    %6 = vector.load %arg2[%c0_6, %c2, %c0_7, %c0_8] : memref<1x4x4x128xf32, #tpu.memory_space<vmem>>, vector<1x1x4x128xf32>
    %7 = vector.shape_cast %6 : vector<1x1x4x128xf32> to vector<4x128xf32>
    %8 = arith.subf %7, %1 : vector<4x128xf32>
    %9 = math.exp %8 : vector<4x128xf32>
    %10 = arith.addf %5, %9 : vector<4x128xf32>
    %c0_9 = arith.constant 0 : index
    %c3 = arith.constant 3 : index
    %c0_10 = arith.constant 0 : index
    %c0_11 = arith.constant 0 : index
    %11 = vector.load %arg2[%c0_9, %c3, %c0_10, %c0_11] : memref<1x4x4x128xf32, #tpu.memory_space<vmem>>, vector<1x1x4x128xf32>
    %12 = vector.shape_cast %11 : vector<1x1x4x128xf32> to vector<4x128xf32>
    %13 = arith.subf %12, %1 : vector<4x128xf32>
    %14 = math.exp %13 : vector<4x128xf32>
    %15 = arith.addf %10, %14 : vector<4x128xf32>
    %cst = arith.constant 1.000000e+30 : f32
    %16 = vector.broadcast %cst : f32 to vector<4x128xf32>
    %17 = arith.cmpf olt, %15, %16 : vector<4x128xf32>
    %cst_12 = arith.constant 1.000000e+00 : f32
    %18 = vector.broadcast %cst_12 : f32 to vector<4x128xf32>
    %19 = arith.addf %18, %15 : vector<4x128xf32>
    %20 = tpu.reciprocal %19 : vector<4x128xf32> -> vector<4x128xf32>
    %21 = arith.mulf %15, %20 : vector<4x128xf32>
    %cst_13 = arith.constant 1.000000e+00 : f32
    %22 = vector.broadcast %cst_13 : f32 to vector<4x128xf32>
    %23 = arith.select %17, %21, %22 : vector<4x128xi1>, vector<4x128xf32>
    %c0_14 = arith.constant 0 : index
    %c0_15 = arith.constant 0 : index
    %c0_16 = arith.constant 0 : index
    %24 = vector.load %arg3[%c0_14, %c0_15, %c0_16] : memref<1x4x128xf32, #tpu.memory_space<vmem>>, vector<1x4x128xf32>
    %25 = vector.shape_cast %24 : vector<1x4x128xf32> to vector<4x128xf32>
    %26 = arith.mulf %25, %23 : vector<4x128xf32>
    %cst_17 = arith.constant dense<0.000000e+00> : vector<128xf32>
    %27 = vector.multi_reduction <add>, %26, %cst_17 [0] : vector<4x128xf32> to vector<128xf32>
    %28 = vector.shape_cast %27 : vector<128xf32> to vector<1x128xf32>
    %29 = vector.shape_cast %28 : vector<1x128xf32> to vector<1x1x1x128xf32>
    %c0_18 = arith.constant 0 : index
    %c0_19 = arith.constant 0 : index
    %c0_20 = arith.constant 0 : index
    %c0_21 = arith.constant 0 : index
    %30 = vector.load %arg4[%c0_18, %c0_19, %c0_20, %c0_21] : memref<1x1x1x128xf32, #tpu.memory_space<vmem>>, vector<1x1x1x128xf32>
    tpu.vector_store %arg4[%c0_18, %c0_19, %c0_20, %c0_21], %29 {strides = array<i32>} : memref<1x1x1x128xf32, #tpu.memory_space<vmem>>, vector<1x1x1x128xf32>,
    return
  }
  func.func @transform_0(%arg0: i32, %arg1: i32) -> (i32, i32, i32, i32) {
    %c0_i32 = arith.constant 0 : i32
    %c0_i32_0 = arith.constant 0 : i32
    %c0_i32_1 = arith.constant 0 : i32
    return %arg0, %c0_i32, %arg1, %c0_i32_0 : i32, i32, i32, i32
  }
  func.func @transform_1(%arg0: i32, %arg1: i32) -> (i32, i32, i32) {
    %c0_i32 = arith.constant 0 : i32
    %c0_i32_0 = arith.constant 0 : i32
    return %arg0, %arg1, %c0_i32 : i32, i32, i32
  }
  func.func @transform_2(%arg0: i32, %arg1: i32) -> (i32, i32, i32, i32) {
    %c0_i32 = arith.constant 0 : i32
    %c0_i32_0 = arith.constant 0 : i32
    %c0_i32_1 = arith.constant 0 : i32
    return %arg0, %arg1, %c0_i32, %c0_i32_0 : i32, i32, i32, i32
  }
}

</mosaic_0001>

<llo_original>
// kernel: tpu_custom_call.1
$region0: #{tpu_custom_call.1}
  #allocation0 [shape = 'u32[]', space=smem, size = 0x4, offset = 0x4, fixed_abs, tag = 'smem constant byte address 0x4 - core index']
  #allocation1 [shape = 'u32[72,128]{1,0:T(1,128)}', space=vmem, size = 0x9000, scoped, tag = 'internal scratch']
  %s0 = inlined_call_operand.hbm [shape: f32[2,4,4,128], index: 0, kind: input, shape index: {}]
  %s1 = inlined_call_operand.hbm [shape: f32[2,4,128], index: 1, kind: input, shape index: {}]
  %s2 = inlined_call_operand.hbm [shape: f32[2,1,1,128], index: 2, kind: output, shape index: {}]
  %s3 = sld [smem:[#allocation0]]
  $region49: #{tpu_custom_call.1} parent=0
    _
  %s5 = ssub.s32 1, %s3
  %s6 = scalar_select 0, %s5, %s3
  $region1: #{tpu_custom_call.1} parent=0
    #allocation2 [shape = 'u8[16384]{0}', space=vmem, size = 0x4000, scoped, tag = 'input window, operand 0']
    #allocation3 [shape = 's32[2]{0}', space=sflag, size = 0x8, scoped, tag = 'scoped memory for tpu_custom_call.1']
    #allocation4 [shape = 's32[2]{0}', space=sflag, size = 0x8, scoped, tag = 'scoped memory for tpu_custom_call.1']
    #allocation5 [shape = 'u8[4096]{0}', space=vmem, size = 0x1000, scoped, tag = 'input window, operand 1']
    #allocation6 [shape = 's32[2]{0}', space=sflag, size = 0x8, scoped, tag = 'scoped memory for tpu_custom_call.1']
    #allocation7 [shape = 'u8[1024]{0}', space=vmem, size = 0x400, scoped, tag = 'output window, operand 0']
    %7 = vsyncpa [#allocation3], 0
    %s8 = scalar_lea.sflag [#allocation3], 1
    %9 = vsyncpa %s8, 0
    %10 = vsyncpa [#allocation6], 0
    %s11 = scalar_lea.sflag [#allocation6], 1
    %12 = vsyncpa %s11, 0
    %13 = vsyncpa [#allocation4], 0
    %s14 = scalar_lea.sflag [#allocation4], 1
    %15 = vsyncpa %s14, 0
    loop: start=0, step=1, limit=4
    $region2: #{tpu_custom_call.1} parent=1 // loop_pre_header
      _
    $region3: #{tpu_custom_call.1} parent=1 // loop_header
      %s17 = sphi 0, %s21
      %p18 = scmp.ge.s32.totalorder %s17, 4
      %s24 = sphi 0, %s36
      %s25 = sphi 0, %s32
      %s26 = sphi 0, %s24
      %s27 = sphi 0, %s25
      %s28 = sphi 0, %s26
      %s29 = sphi 0, %s27
      %s41 = sphi 0, %s43
      %s44 = sphi 0, %s41
      %s45 = sphi 0, %s44
      %s61 = sphi 0, %s45
      %s69 = sphi 0, %s71
      %s72 = sphi 0, %s69
      %s73 = sphi 0, %s72
      %s89 = sphi 0, %s73
      %s97 = sphi 0, %s99
      %s100 = sphi 0, %s97
      %s101 = sphi 0, %s100
      %s117 = sphi 0, %s101
    $region4: #{tpu_custom_call.1} parent=1 // loop_header_branch
      %20 = sbr.rel (%p18) target = $region8
    $region5: #{tpu_custom_call.1} parent=1 // loop_body
      %s22 = ssub.s32 %s17, 1
      %s23 = ssub.s32 %s17, 2
      %s30 = sadd.s32 1, %s25
      %p31 = scmp.ge.s32.totalorder %s30, 1
      %s32 = scalar_select %p31, 0, %s30
      %s33 = sadd.s32 1, %s24
      %s34 = scalar_select %p31, %s33, %s24
      %p35 = scmp.ge.s32.totalorder %s34, 2
      %s36 = scalar_select %p35, 0, %s34
      %s37 = ssub.s32 %s24, %s36
      %s38 = ssub.s32 %s25, %s32
      %s39 = sor.u32 %s37, %s38
      %p40 = scmp.eq.s32.totalorder %s39, 0
      %s42 = sadd.s32 %s41, 1
      %s43 = scalar_select %p40, %s41, %s42
      %p46 = pneg %p40
      %p47 = scmp.eq.s32.totalorder %s17, 1
      %p48 = por %p46, %p47
      %p49 = scmp.ne.s32.totalorder %s41, %s44
      %p50 = scmp.eq.s32.totalorder %s17, 0
      %p51 = por %p49, %p50
      %p52 = scmp.ne.s32.totalorder %s41, %s44
      %p53 = scmp.eq.s32.totalorder %s22, 1
      %p54 = por %p52, %p53
      %p55 = scmp.ne.s32.totalorder %s44, %s45
      %p56 = scmp.eq.s32.totalorder %s22, 0
      %p57 = por %p55, %p56
      %p58 = scmp.ne.s32.totalorder %s44, %s45
      %p59 = scmp.eq.s32.totalorder %s23, 1
      %p60 = por %p58, %p59
      %p62 = scmp.ne.s32.totalorder %s45, %s61
      %p63 = scmp.eq.s32.totalorder %s23, 0
      %p64 = por %p62, %p63
      %s65 = ssub.s32 %s24, %s36
      %s66 = ssub.s32 %s25, %s32
      %s67 = sor.u32 %s65, %s66
      %p68 = scmp.eq.s32.totalorder %s67, 0
      %s70 = sadd.s32 %s69, 1
      %s71 = scalar_select %p68, %s69, %s70
      %p74 = pneg %p68
      %p75 = scmp.eq.s32.totalorder %s17, 1
      %p76 = por %p74, %p75
      %p77 = scmp.ne.s32.totalorder %s69, %s72
      %p78 = scmp.eq.s32.totalorder %s17, 0
      %p79 = por %p77, %p78
      %p80 = scmp.ne.s32.totalorder %s69, %s72
      %p81 = scmp.eq.s32.totalorder %s22, 1
      %p82 = por %p80, %p81
      %p83 = scmp.ne.s32.totalorder %s72, %s73
      %p84 = scmp.eq.s32.totalorder %s22, 0
      %p85 = por %p83, %p84
      %p86 = scmp.ne.s32.totalorder %s72, %s73
      %p87 = scmp.eq.s32.totalorder %s23, 1
      %p88 = por %p86, %p87
      %p90 = scmp.ne.s32.totalorder %s73, %s89
      %p91 = scmp.eq.s32.totalorder %s23, 0
      %p92 = por %p90, %p91
      %s93 = ssub.s32 %s24, %s36
      %s94 = ssub.s32 %s25, %s32
      %s95 = sor.u32 %s93, %s94
      %p96 = scmp.eq.s32.totalorder %s95, 0
      %s98 = sadd.s32 %s97, 1
      %s99 = scalar_select %p96, %s97, %s98
      %p102 = pneg %p96
      %p103 = scmp.eq.s32.totalorder %s17, 1
      %p104 = por %p102, %p103
      %p105 = scmp.ne.s32.totalorder %s97, %s100
      %p106 = scmp.eq.s32.totalorder %s17, 0
      %p107 = por %p105, %p106
      %p108 = scmp.ne.s32.totalorder %s97, %s100
      %p109 = scmp.eq.s32.totalorder %s22, 1
      %p110 = por %p108, %p109
      %p111 = scmp.ne.s32.totalorder %s100, %s101
      %p112 = scmp.eq.s32.totalorder %s22, 0
      %p113 = por %p111, %p112
      %p114 = scmp.ne.s32.totalorder %s100, %s101
      %p115 = scmp.eq.s32.totalorder %s23, 1
      %p116 = por %p114, %p115
      %p118 = scmp.ne.s32.totalorder %s101, %s117
      %p119 = scmp.eq.s32.totalorder %s23, 0
      %p120 = por %p118, %p119
      %p121 = scmp.le.s32.totalorder 1, %s17
      %p122 = scmp.lt.s32.totalorder %s17, 3
      %p123 = pnand %p121, %p122
      %p124 = pneg %p123
      // Predicated region
      $region9: #{tpu_custom_call.1} parent=5 // pred_check
        _
      $region10: #{tpu_custom_call.1} parent=5 // pred_check_branch
        %126 = sbr.rel (%p123) target = $region12
      $region11: #{tpu_custom_call.1} parent=5 // pred_region
        %s127 = ssub.s32 %s17, 1
      $region12: #{tpu_custom_call.1} parent=5 // pred_fallthru
        _
      %p128 = scmp.lt.s32.totalorder %s17, 2
      // Predicated region
      $region13: #{tpu_custom_call.1} parent=5 // pred_check
        %p129 = pneg %p128
      $region14: #{tpu_custom_call.1} parent=5 // pred_check_branch
        %131 = sbr.rel (%p129) target = $region16
      $region15: #{tpu_custom_call.1} parent=5 // pred_region
        // Predicated region
        $region17: #{tpu_custom_call.1} parent=15 // pred_check
          %p132 = pneg %p51
        $region18: #{tpu_custom_call.1} parent=15 // pred_check_branch
          %134 = sbr.rel (%p132) target = $region20
        $region19: #{tpu_custom_call.1} parent=15 // pred_region
          %s135 = sand.u32 %s41, 1
          %s136 = scalar_lea.sflag [#allocation3], %s135
          %s137 = sand.u32 %s41, 1
          %s138 = smul.addr %s137, 16
          %s139 = scalar_lea.vmem [#allocation2], %s138
          %141 = vsyncadd %s136, 0
          %s142 = smul.addr %s24, 4
          %s143 = sadd.s32 %s25, %s142
          %s144 = smul.addr %s143, 4
          %s145 = scalar_lea.hbm %s0, %s144
          %s146 = sshll.u32 %s145, 4
          %s147 = int_to_ptr.hbm [resolvable:$true] %s146
          %s148 = sshll.u32 %s139, 4
          %s149 = int_to_ptr.vmem [resolvable:$true] %s148
          %154 = dma.hbm_to_vmem [thread:$0]  %s147, 256, %s149, %s136, 64, 64, 4
        $region20: #{tpu_custom_call.1} parent=15 // pred_fallthru
          _
        // Predicated region
        $region21: #{tpu_custom_call.1} parent=15 // pred_check
          %p155 = pneg %p79
        $region22: #{tpu_custom_call.1} parent=15 // pred_check_branch
          %157 = sbr.rel (%p155) target = $region24
        $region23: #{tpu_custom_call.1} parent=15 // pred_region
          %s158 = sand.u32 %s69, 1
          %s159 = scalar_lea.sflag [#allocation6], %s158
          %s160 = sand.u32 %s69, 1
          %s161 = smul.addr %s160, 4
          %s162 = scalar_lea.vmem [#allocation5], %s161
          %164 = vsyncadd %s159, 0
          %s165 = sadd.s32 %s25, %s24
          %s166 = smul.addr %s165, 4
          %s167 = scalar_lea.hbm %s1, %s166
          %s169 = sshll.u32 %s167, 4
          %s170 = int_to_ptr.hbm [resolvable:$true] %s169
          %s171 = sshll.u32 %s162, 4
          %s172 = int_to_ptr.vmem [resolvable:$true] %s171
          %174 = dma.hbm_to_vmem [thread:$0]  %s170, 64, %s172, %s159
        $region24: #{tpu_custom_call.1} parent=15 // pred_fallthru
          _
      $region16: #{tpu_custom_call.1} parent=5 // pred_fallthru
        _
      %p175 = scmp.le.s32.totalorder 1, %s17
      %p176 = scmp.lt.s32.totalorder %s17, 3
      %p177 = pnand %p175, %p176
      %p178 = pneg %p177
      // Predicated region
      $region25: #{tpu_custom_call.1} parent=5 // pred_check
        _
      $region26: #{tpu_custom_call.1} parent=5 // pred_check_branch
        %180 = sbr.rel (%p177) target = $region28
      $region27: #{tpu_custom_call.1} parent=5 // pred_region
        %s181 = ssub.s32 %s17, 1
        %s182 = sand.u32 %s44, 1
        %s183 = scalar_lea.sflag [#allocation3], %s182
        %s184 = sand.u32 %s44, 1
        %s185 = smul.addr %s184, 16
        %s186 = scalar_lea.vmem [#allocation2], %s185
        // Predicated region
        $region29: #{tpu_custom_call.1} parent=27 // pred_check
          %p187 = pneg %p57
        $region30: #{tpu_custom_call.1} parent=27 // pred_check_branch
          %189 = sbr.rel (%p187) target = $region32
        $region31: #{tpu_custom_call.1} parent=27 // pred_region
          %191 = dma.done %s183, 256
        $region32: #{tpu_custom_call.1} parent=27 // pred_fallthru
          _
        %s192 = sand.u32 %s72, 1
        %s193 = scalar_lea.sflag [#allocation6], %s192
        %s194 = sand.u32 %s72, 1
        %s195 = smul.addr %s194, 4
        %s196 = scalar_lea.vmem [#allocation5], %s195
        // Predicated region
        $region33: #{tpu_custom_call.1} parent=27 // pred_check
          %p197 = pneg %p85
        $region34: #{tpu_custom_call.1} parent=27 // pred_check_branch
          %199 = sbr.rel (%p197) target = $region36
        $region35: #{tpu_custom_call.1} parent=27 // pred_region
          %201 = dma.done %s193, 64
        $region36: #{tpu_custom_call.1} parent=27 // pred_fallthru
          _
        %s202 = sand.u32 %s44, 1
        %s203 = scalar_lea.sflag [#allocation3], %s202
        %s204 = sand.u32 %s44, 1
        %s205 = smul.addr %s204, 16
        %s206 = scalar_lea.vmem [#allocation2], %s205
        %p207 = pneg %p57
        %p208 = pneg %p54
        %s209 = sand.u32 %s72, 1
        %s210 = scalar_lea.sflag [#allocation6], %s209
        %s211 = sand.u32 %s72, 1
        %s212 = smul.addr %s211, 4
        %s213 = scalar_lea.vmem [#allocation5], %s212
        %p214 = pneg %p85
        %p215 = pneg %p82
        %p216 = pneg %p113
        %p217 = pneg %p110
        %s218 = sand.u32 %s100, 1
        %s219 = scalar_lea.sflag [#allocation4], %s218
        %s220 = sand.u32 %s100, 1
        %s221 = scalar_lea.vmem [#allocation7], %s220
        %v222 = vld [vmem:[%s186] sm:$0xf]
        %s223 = scalar_lea.vmem %s186, 4 [#allocation2]
        %v224 = vld [vmem:[%s223] sm:$0xf]
        %v225 = vsub.f32 %v224, %v222
        %v226 = vmul.f32 %v225, 1.442695
        %v227 = vpow.pop %v226
        %s228 = scalar_lea.vmem %s186, 8 [#allocation2]
        %v229 = vld [vmem:[%s228] sm:$0xf]
        %v230 = vsub.f32 %v229, %v222
        %v231 = vmul.f32 %v230, 1.442695
        %v232 = vpow.pop %v231
        %v233 = vadd.f32 %v227, %v232
        %s234 = scalar_lea.vmem %s186, 12 [#allocation2]
        %v235 = vld [vmem:[%s234] sm:$0xf]
        %v236 = vsub.f32 %v235, %v222
        %v237 = vmul.f32 %v236, 1.442695
        %v238 = vpow.pop %v237
        %v239 = vadd.f32 %v233, %v238
        %vm240 = vcmp.lt.f32.partialorder %v239, 1e+30
        %v241 = vadd.f32 %v239, 1.0
        %v242 = vrcp.pop %v241
        %v243 = vmul.f32 %v241, %v242
        %v244 = vsub.f32 1.0, %v243
        %v245 = vmul.f32 %v242, %v244
        %v246 = vadd.f32 %v242, %v245
        %vm247 = vweird.f32 %v241
        %vm248 = vweird.f32 %v242
        %vm249 = vmor %vm247, %vm248
        %v250 = vsel %vm249, %v242, %v246
        %v251 = vand.u32 2147483647, %v241
        %vm252 = vcmp.eq.f32.partialorder %v251, 8.507059e+37
        %v253 = vand.u32 %v241, 2147483648
        %v254 = vor.u32 1.1754944e-38, %v253
        %v255 = vsel %vm252, %v254, %v250
        %v256 = vmul.f32 %v239, %v255
        %v257 = vsel %vm240, %v256, 1.0
        %v258 = vld [vmem:[%s196] sm:$0xf]
        %v259 = vmul.f32 %v258, %v257
        %vm260 = vcmask 1043456
        %v261 = vsel %vm260, %v259, 0.0
        %v262 = vrot.slane %v261, 4
        %v263 = vadd.f32 %v261, %v262
        %v264 = vrot.slane %v263, 2
        %v265 = vadd.f32 %v263, %v264
        %v266 = vrot.slane %v265, 1
        %v267 = vadd.f32 %v265, %v266
        %268 = vst [vmem:[%s221] sm:$0x1] %v267
        %s269 = sand.u32 %s100, 1
        %s270 = scalar_lea.sflag [#allocation4], %s269
        %s271 = sand.u32 %s100, 1
        %s272 = scalar_lea.vmem [#allocation7], %s271
        // Predicated region
        $region37: #{tpu_custom_call.1} parent=27 // pred_check
          %p273 = pneg %p110
        $region38: #{tpu_custom_call.1} parent=27 // pred_check_branch
          %275 = sbr.rel (%p273) target = $region40
        $region39: #{tpu_custom_call.1} parent=27 // pred_region
          %277 = vsyncadd %s270, 0
          %s278 = sadd.s32 %s27, %s26
          %s279 = scalar_lea.hbm %s2, %s278
          %s281 = sshll.u32 %s272, 4
          %s282 = int_to_ptr.vmem [resolvable:$true] %s281
          %s283 = sshll.u32 %s279, 4
          %s284 = int_to_ptr.hbm [resolvable:$true] %s283
          %286 = dma.vmem_to_hbm [thread:$0]  %s282, 16, %s284, %s270
        $region40: #{tpu_custom_call.1} parent=27 // pred_fallthru
          _
      $region28: #{tpu_custom_call.1} parent=5 // pred_fallthru
        _
      %p287 = scmp.le.s32.totalorder 2, %s17
      // Predicated region
      $region41: #{tpu_custom_call.1} parent=5 // pred_check
        %p288 = pneg %p287
      $region42: #{tpu_custom_call.1} parent=5 // pred_check_branch
        %290 = sbr.rel (%p288) target = $region44
      $region43: #{tpu_custom_call.1} parent=5 // pred_region
        %s291 = ssub.s32 %s17, 2
        // Predicated region
        $region45: #{tpu_custom_call.1} parent=43 // pred_check
          %p292 = pneg %p116
        $region46: #{tpu_custom_call.1} parent=43 // pred_check_branch
          %294 = sbr.rel (%p292) target = $region48
        $region47: #{tpu_custom_call.1} parent=43 // pred_region
          %s295 = sand.u32 %s101, 1
          %s296 = scalar_lea.sflag [#allocation4], %s295
          %s297 = sand.u32 %s101, 1
          %s298 = scalar_lea.vmem [#allocation7], %s297
          %300 = dma.done %s296, 16
        $region48: #{tpu_custom_call.1} parent=43 // pred_fallthru
          _
      $region44: #{tpu_custom_call.1} parent=5 // pred_fallthru
        _
    $region6: #{tpu_custom_call.1} parent=1 // loop_footer
      %s21 = sadd.s32 1, %s17
    $region7: #{tpu_custom_call.1} parent=1 // loop_footer_branch
      %16 = sbr.rel target = $region3
    $region8: #{tpu_custom_call.1} parent=1 // loop_exit
      _
    %301 = vsyncpa [#allocation3], 1
    %s302 = scalar_lea.sflag [#allocation3], 1
    %303 = vsyncpa %s302, 1
    %304 = vsyncpa [#allocation6], 1
    %s305 = scalar_lea.sflag [#allocation6], 1
    %306 = vsyncpa %s305, 1
    %307 = vsyncpa [#allocation4], 1
    %s308 = scalar_lea.sflag [#allocation4], 1
    %309 = vsyncpa %s308, 1

</llo_original>
